<compile_context>
chip_gen: v5e
topology: v5e:2x2
jax: 0.10.0
libtpu: 0.0.40
codegen_flags: <defaults>
</compile_context>

<pallas_src>
import functools

import jax
import jax.numpy as jnp
from jax import lax
from jax.experimental import pallas as pl
from jax.experimental.pallas import tpu as pltpu

EPS = 1e-5            # torch.nn.BatchNorm1d default
H1, H2 = 64, 32       # Topology_Extraction hidden sizes


# ---------------------------------------------------------------------------
# Sizing helpers
# ---------------------------------------------------------------------------
def _vmem_limit_bytes():
    try:
        return int(pltpu.get_tpu_info().vmem_capacity_bytes * 3 // 4)
    except Exception:
        return 32 * 1024 * 1024


def _round_up(x, m):
    return (x + m - 1) // m * m


def _choose_tiling(n, mask_budget_bytes=2 << 20):
    """Row-tile size for the in-kernel aggregation loops.

    The live [tile, n_pad] bf16 mask is bounded by `mask_budget_bytes`; the tile
    is a multiple of 16 (bf16 sublane packing) and N is padded to a tile multiple.
    """
    n16 = _round_up(max(n, 16), 16)
    cap = max(16, (mask_budget_bytes // (2 * n16)) // 16 * 16)
    tile = min(cap, n16)
    n_pad = _round_up(n, tile)
    return tile, n_pad


# ---------------------------------------------------------------------------
# Fused Topology_Extraction kernel (SAGE -> BN -> ReLU, twice)
# ---------------------------------------------------------------------------
def _topology_kernel(code_r_ref, code_c_ref, inv_deg_ref, rowmask_ref, x_ref,
                     w1s_ref, b1_ref, g1_ref, be1_ref,
                     w2s_ref, b2_ref, g2_ref, be2_ref,
                     out_ref,
                     h1_s, projl_s, projr_s, h2_s,
                     *, tile_n, inv_n):
    n_pad = x_ref.shape[0]
    n_tiles = n_pad // tile_n
    unroll = bool(n_tiles <= 8)

    code_c = code_c_ref[...]                                       # [1, n_pad] int32

    def class_mask(r0):
        # code_r[i] = label_i if valid else -1; code_c[j] = label_j if valid else -2
        # (padded rows/cols use the same sentinels), so a single integer compare
        # reproduces (label_i == label_j) & valid_i & valid_j.  Self-edges are
        # intentionally included; the exact self term is subtracted post-matmul.
        code_rt = code_r_ref[pl.ds(r0, tile_n), :]                 # [tn, 1]
        return (code_rt == code_c).astype(jnp.bfloat16)            # [tn, n_pad]

    def bn_relu(h, s1, s2, g, be):
        mean = s1 * inv_n
        var = jnp.maximum(s2 * inv_n - mean * mean, 0.0)           # clamp f32 rounding
        return jnp.maximum((h - mean) * lax.rsqrt(var + EPS) * g + be, 0.0)

    # ---- phase A: layer-1 class-guided mean aggregation + fused SAGE-1 proj ----
    w1s = w1s_ref[...]
    b1 = b1_ref[...]

    def phase_a(t, carry):
        r0 = pl.multiple_of(t * tile_n, 16)
        inv_deg = inv_deg_ref[pl.ds(r0, tile_n), :]                # [tn, 1] (0 if isolated)
        x_t = x_ref[pl.ds(r0, tile_n), :]                          # [tn, C] bf16
        x_t32 = x_t.astype(jnp.float32)
        agg = jnp.dot(class_mask(r0), x_ref[...],
                      preferred_element_type=jnp.float32)          # MXU, f32 acc
        agg = (agg - x_t32) * inv_deg                              # exact mean, self excluded
        # fused SAGE projection: [agg | x_root] @ [[w_l],[w_r]]  (one K=2C matmul)
        h1_s[pl.ds(r0, tile_n), :] = jnp.dot(
            jnp.concatenate([agg, x_t32], axis=1), w1s,
            preferred_element_type=jnp.float32) + b1
        return carry

    lax.fori_loop(0, n_tiles, phase_a, 0, unroll=unroll)

    # ---- phase B: BN1 + ReLU + fused layer-2 projection (full array, in VMEM) ---
    rm = rowmask_ref[...]                                          # padded rows -> 0
    h1 = h1_s[...]
    h1m = h1 * rm
    h1n = bn_relu(h1,
                  jnp.sum(h1m, axis=0, keepdims=True),
                  jnp.sum(h1m * h1, axis=0, keepdims=True),
                  g1_ref[...], be1_ref[...])
    proj = jnp.dot(h1n, w2s_ref[...], preferred_element_type=jnp.float32)  # [n, 2*H2]
    projl_s[...] = proj[:, :H2].astype(jnp.bfloat16)               # aggregation operand
    projr_s[...] = proj[:, H2:] + b2_ref[...]                      # root term + bias

    # ---- phase C: layer-2 aggregation (project-before-aggregate reorder) --------
    def phase_c(t, carry):
        r0 = pl.multiple_of(t * tile_n, 16)
        inv_deg = inv_deg_ref[pl.ds(r0, tile_n), :]
        p_t = projl_s[pl.ds(r0, tile_n), :]
        agg = jnp.dot(class_mask(r0), projl_s[...],
                      preferred_element_type=jnp.float32)
        agg = (agg - p_t.astype(jnp.float32)) * inv_deg
        h2_s[pl.ds(r0, tile_n), :] = agg + projr_s[pl.ds(r0, tile_n), :]
        return carry

    lax.fori_loop(0, n_tiles, phase_c, 0, unroll=unroll)

    # ---- phase D: BN2 + ReLU -> single HBM store ---------------------------------
    h2 = h2_s[...]
    h2m = h2 * rm
    out_ref[...] = bn_relu(h2,
                           jnp.sum(h2m, axis=0, keepdims=True),
                           jnp.sum(h2m * h2, axis=0, keepdims=True),
                           g2_ref[...], be2_ref[...])


def _topology_extraction(params, x_bf16, code_r, code_c, inv_deg, rowmask,
                         *, tile_n, n_true):
    """Single fused pallas_call for Topology_Extraction on the padded node set."""
    n_pad, c = x_bf16.shape
    f32 = jnp.float32

    w1s = jnp.concatenate([params["w1l"], params["w1r"]], axis=0)   # [2C, H1]
    w2s = jnp.concatenate([params["w2l"], params["w2r"]], axis=1)   # [H1, 2*H2]

    def fspec(shape):
        return pl.BlockSpec(shape, lambda i: (0,) * len(shape))

    flops = 2 * n_pad * n_pad * (c + H2) + 2 * n_pad * (2 * c * H1 + H1 * 2 * H2)
    bytes_accessed = (2 * n_pad * c + 4 * n_pad * H2 + 16 * n_pad
                      + 4 * (2 * c * H1 + H1 * 2 * H2))

    return pl.pallas_call(
        functools.partial(_topology_kernel, tile_n=tile_n, inv_n=1.0 / n_true),
        grid=(1,),
        in_specs=[fspec((n_pad, 1)),           # code_r
                  fspec((1, n_pad)),           # code_c
                  fspec((n_pad, 1)),           # inv_deg
                  fspec((n_pad, 1)),           # rowmask (real-node indicator)
                  fspec((n_pad, c)),           # x (bf16)
                  fspec((2 * c, H1)), fspec((1, H1)), fspec((1, H1)), fspec((1, H1)),
                  fspec((H1, 2 * H2)), fspec((1, H2)), fspec((1, H2)), fspec((1, H2))],
        out_specs=fspec((n_pad, H2)),
        out_shape=jax.ShapeDtypeStruct((n_pad, H2), f32),
        scratch_shapes=[pltpu.VMEM((n_pad, H1), f32),          # h1 (pre-BN)
                        pltpu.VMEM((n_pad, H2), jnp.bfloat16), # projl
                        pltpu.VMEM((n_pad, H2), f32),          # projr + bias
                        pltpu.VMEM((n_pad, H2), f32)],         # h2 (pre-BN)
        compiler_params=pltpu.CompilerParams(
            dimension_semantics=("arbitrary",),
            vmem_limit_bytes=_vmem_limit_bytes()),
        cost_estimate=pl.CostEstimate(flops=int(flops), transcendentals=0,
                                      bytes_accessed=int(bytes_accessed)),
    )(code_r, code_c, inv_deg, rowmask, x_bf16, w1s, params["b1"],
      params["g1"], params["be1"], w2s, params["b2"], params["g2"], params["be2"])


# ---------------------------------------------------------------------------
# Parameters & forward
# ---------------------------------------------------------------------------
def init_params(key, in_channels):
    """Deterministic synthetic parameters matching the module's __init__ shapes."""
    ks = jax.random.split(key, 4)

    def lin(k, fan_in, fan_out):
        bound = 1.0 / float(fan_in) ** 0.5
        return jax.random.uniform(k, (fan_in, fan_out), jnp.float32, -bound, bound)

    return {
        # SAGEConv(in_channels, 64): lin_l (aggregated, with bias) and lin_r (root)
        "w1l": lin(ks[0], in_channels, H1),
        "w1r": lin(ks[1], in_channels, H1),
        "b1": jnp.zeros((1, H1), jnp.float32),
        "g1": jnp.ones((1, H1), jnp.float32),
        "be1": jnp.zeros((1, H1), jnp.float32),
        # SAGEConv(64, 32)
        "w2l": lin(ks[2], H1, H2),
        "w2r": lin(ks[3], H1, H2),
        "b2": jnp.zeros((1, H2), jnp.float32),
        "g2": jnp.ones((1, H2), jnp.float32),
        "be2": jnp.zeros((1, H2), jnp.float32),
    }


def cross_graph_forward(params, src_feat, tar_feat, src_labels, tar_labels, mask):
    """CrossGraph.forward: concat -> class-guided graph -> Topology_Extraction.

    Fully traceable (no host sync); the adjacency is never materialized in HBM —
    the kernel rebuilds it per row tile from sentinel-coded labels.
    """
    feat = jnp.concatenate([src_feat, tar_feat], axis=0).astype(jnp.float32)  # [N, C]
    n, c = feat.shape

    labels = jnp.concatenate([src_labels, tar_labels], axis=0).astype(jnp.int32)
    valid = jnp.concatenate(
        [jnp.ones_like(src_labels, dtype=bool), mask.astype(bool)], axis=0)

    # Per-node neighbour count (valid, same class, no self).  XLA fuses the
    # broadcast-compare into the reduction, so no [N,N] array hits HBM, and the
    # kernel needs no cross-lane deg reduction.
    same_valid = (labels[:, None] == labels[None, :]) & valid[None, :] & valid[:, None]
    deg = (jnp.sum(same_valid, axis=1) - valid.astype(jnp.int32)).astype(jnp.float32)
    inv_deg = jnp.where(deg > 0.0, 1.0 / jnp.maximum(deg, 1.0), 0.0)
    has_edges = jnp.any(deg > 0.0)

    # Sentinel codes (assumes class labels >= 0): one int compare in-kernel
    # reproduces (label_i == label_j) & valid_i & valid_j.
    code_r = jnp.where(valid, labels, -1)
    code_c = jnp.where(valid, labels, -2)

    tile_n, n_pad = _choose_tiling(n)
    pad = n_pad - n
    x_bf16 = feat.astype(jnp.bfloat16)
    if pad:
        x_bf16 = jnp.pad(x_bf16, ((0, pad), (0, 0)))
        code_r = jnp.pad(code_r, (0, pad), constant_values=-1)
        code_c = jnp.pad(code_c, (0, pad), constant_values=-2)
        inv_deg = jnp.pad(inv_deg, (0, pad))
    rowmask = (jnp.arange(n_pad) < n).astype(jnp.float32)

    out = _topology_extraction(params, x_bf16, code_r[:, None], code_c[None, :],
                               inv_deg[:, None], rowmask[:, None],
                               tile_n=tile_n, n_true=n)[:n]

    # Empty-graph early return (`if share_graph == None: return feat`) without a
    # host sync: edges exist iff any node has a valid same-class neighbour.
    if c == out.shape[1]:
        out = jnp.where(has_edges, out, feat)
    # TODO(synk): when in_channels != 32 the torch early-return changes the output
    # shape, which cannot be expressed as traced control flow; the GCN output
    # (zero aggregation on an empty graph) is returned instead in that case.
    return out


def cross_graph_reference(params, src_feat, tar_feat, src_labels, tar_labels, mask):
    """Pure-JAX f32 reference mirroring the original PyTorch forward."""
    feat = jnp.concatenate([src_feat, tar_feat], axis=0)
    n = feat.shape[0]
    labels = jnp.concatenate([src_labels, tar_labels], axis=0)
    valid = jnp.concatenate(
        [jnp.ones_like(src_labels, dtype=bool), mask.astype(bool)], axis=0)
    same = (labels[:, None] == labels[None, :]) & valid[:, None] & valid[None, :]
    same = same & ~jnp.eye(n, dtype=bool)
    adj = same.astype(jnp.float32)
    adj_norm = adj / jnp.maximum(adj.sum(axis=1, keepdims=True), 1.0)

    def sage_bn_relu(x, wl, wr, b, g, be):
        h = (adj_norm @ x) @ wl + x @ wr + b
        m = jnp.mean(h, axis=0, keepdims=True)
        v = jnp.mean((h - m) ** 2, axis=0, keepdims=True)
        return jnp.maximum((h - m) * lax.rsqrt(v + EPS) * g + be, 0.0)

    h = sage_bn_relu(feat, params["w1l"], params["w1r"], params["b1"],
                     params["g1"], params["be1"])
    h = sage_bn_relu(h, params["w2l"], params["w2r"], params["b2"],
                     params["g2"], params["be2"])
    if feat.shape[1] == h.shape[1]:
        h = jnp.where(jnp.any(same), h, feat)
    return h


if __name__ == "__main__":
    in_channels = 32
    batch = 32                    # 32 source + 32 target nodes -> N = 64
    num_classes = 4

    key = jax.random.PRNGKey(0)
    kp, ks, kt, kls, klt, km = jax.random.split(key, 6)

    params = init_params(kp, in_channels)
    src_feat = jax.random.normal(ks, (batch, in_channels), jnp.float32)
    tar_feat = jax.random.normal(kt, (batch, in_channels), jnp.float32)
    src_labels = jax.random.randint(kls, (batch,), 0, num_classes)
    tar_labels = jax.random.randint(klt, (batch,), 0, num_classes)
    mask = jax.random.uniform(km, (batch,)) > 0.3   # pseudo-label confidence mask

    fwd = jax.jit(cross_graph_forward)
    out = jax.block_until_ready(
        fwd(params, src_feat, tar_feat, src_labels, tar_labels, mask))

    ref = cross_graph_reference(params, src_feat, tar_feat,
                                src_labels, tar_labels, mask)
    assert out.shape == (2 * batch, H2) and out.dtype == jnp.float32
    err = float(jnp.max(jnp.abs(out - ref)))
    assert jnp.allclose(out, ref, atol=5e-2, rtol=5e-2), f"max err {err}"
    print("KERNEL_OK")
</pallas_src>

<mosaic_0001>
module attributes {stable_mosaic.version = 11 : i64} {
  func.func @_topology_kernel(%arg0: i32, %arg1: memref<64x1xi32, #tpu.memory_space<vmem>>, %arg2: memref<1x64xi32, #tpu.memory_space<vmem>>, %arg3: memref<64x1xf32, #tpu.memory_space<vmem>>, %arg4: memref<64x1xf32, #tpu.memory_space<vmem>>, %arg5: memref<64x32xbf16, #tpu.memory_space<vmem>>, %arg6: memref<64x64xf32, #tpu.memory_space<vmem>>, %arg7: memref<1x64xf32, #tpu.memory_space<vmem>>, %arg8: memref<1x64xf32, #tpu.memory_space<vmem>>, %arg9: memref<1x64xf32, #tpu.memory_space<vmem>>, %arg10: memref<64x64xf32, #tpu.memory_space<vmem>>, %arg11: memref<1x32xf32, #tpu.memory_space<vmem>>, %arg12: memref<1x32xf32, #tpu.memory_space<vmem>>, %arg13: memref<1x32xf32, #tpu.memory_space<vmem>>, %arg14: memref<64x32xf32, #tpu.memory_space<vmem>>, %arg15: memref<64x64xf32, #tpu.memory_space<vmem>>, %arg16: memref<64x32xbf16, #tpu.memory_space<vmem>>, %arg17: memref<64x32xf32, #tpu.memory_space<vmem>>, %arg18: memref<64x32xf32, #tpu.memory_space<vmem>>) attributes {dimension_semantics = [#tpu.dimension_semantics<arbitrary>], iteration_bounds = array<i64: 1>, scalar_prefetch = 0 : i64, scratch_operands = 4 : i64, tpu.core_type = #tpu.core_type<tc>, window_params = [{pipeline_mode = #tpu.pipeline_mode<synchronous>, transform_indices = @transform_0, window_bounds = array<i64: 64, 1>}, {pipeline_mode = #tpu.pipeline_mode<synchronous>, transform_indices = @transform_1, window_bounds = array<i64: 1, 64>}, {pipeline_mode = #tpu.pipeline_mode<synchronous>, transform_indices = @transform_2, window_bounds = array<i64: 64, 1>}, {pipeline_mode = #tpu.pipeline_mode<synchronous>, transform_indices = @transform_3, window_bounds = array<i64: 64, 1>}, {pipeline_mode = #tpu.pipeline_mode<synchronous>, transform_indices = @transform_4, window_bounds = array<i64: 64, 32>}, {pipeline_mode = #tpu.pipeline_mode<synchronous>, transform_indices = @transform_5, window_bounds = array<i64: 64, 64>}, {pipeline_mode = #tpu.pipeline_mode<synchronous>, transform_indices = @transform_6, window_bounds = array<i64: 1, 64>}, {pipeline_mode = #tpu.pipeline_mode<synchronous>, transform_indices = @transform_7, window_bounds = array<i64: 1, 64>}, {pipeline_mode = #tpu.pipeline_mode<synchronous>, transform_indices = @transform_8, window_bounds = array<i64: 1, 64>}, {pipeline_mode = #tpu.pipeline_mode<synchronous>, transform_indices = @transform_9, window_bounds = array<i64: 64, 64>}, {pipeline_mode = #tpu.pipeline_mode<synchronous>, transform_indices = @transform_10, window_bounds = array<i64: 1, 32>}, {pipeline_mode = #tpu.pipeline_mode<synchronous>, transform_indices = @transform_11, window_bounds = array<i64: 1, 32>}, {pipeline_mode = #tpu.pipeline_mode<synchronous>, transform_indices = @transform_12, window_bounds = array<i64: 1, 32>}, {pipeline_mode = #tpu.pipeline_mode<synchronous>, transform_indices = @transform_13, window_bounds = array<i64: 64, 32>}]} {
    %c0 = arith.constant 0 : index
    %c0_0 = arith.constant 0 : index
    %0 = vector.load %arg2[%c0, %c0_0] : memref<1x64xi32, #tpu.memory_space<vmem>>, vector<1x64xi32>
    %c0_1 = arith.constant 0 : index
    %c0_2 = arith.constant 0 : index
    %1 = vector.load %arg6[%c0_1, %c0_2] : memref<64x64xf32, #tpu.memory_space<vmem>>, vector<64x64xf32>
    %c0_3 = arith.constant 0 : index
    %c0_4 = arith.constant 0 : index
    %2 = vector.load %arg7[%c0_3, %c0_4] : memref<1x64xf32, #tpu.memory_space<vmem>>, vector<1x64xf32>
    %c0_i32 = arith.constant 0 : i32
    %c64_i32 = arith.constant 64 : i32
    %3 = arith.muli %c0_i32, %c64_i32 : i32
    %4 = tpu.assume_multiple %3, 16 : i32
    %5 = arith.index_cast %4 : i32 to index
    %c0_5 = arith.constant 0 : index
    %6 = vector.load %arg3[%5, %c0_5] : memref<64x1xf32, #tpu.memory_space<vmem>>, vector<64x1xf32>
    %7 = arith.index_cast %4 : i32 to index
    %c0_6 = arith.constant 0 : index
    %8 = vector.load %arg5[%7, %c0_6] : memref<64x32xbf16, #tpu.memory_space<vmem>>, vector<64x32xbf16>
    %9 = arith.extf %8 : vector<64x32xbf16> to vector<64x32xf32>
    %10 = arith.index_cast %4 : i32 to index
    %c0_7 = arith.constant 0 : index
    %11 = vector.load %arg1[%10, %c0_7] : memref<64x1xi32, #tpu.memory_space<vmem>>, vector<64x1xi32>
    %12 = vector.broadcast %11 : vector<64x1xi32> to vector<64x64xi32>
    %13 = vector.broadcast %0 : vector<1x64xi32> to vector<64x64xi32>
    %14 = arith.cmpi eq, %12, %13 : vector<64x64xi32>
    %15 = arith.extui %14 : vector<64x64xi1> to vector<64x64xi32>
    %16 = arith.sitofp %15 : vector<64x64xi32> to vector<64x64xf32>
    %17 = arith.truncf %16 : vector<64x64xf32> to vector<64x64xbf16>
    %c0_8 = arith.constant 0 : index
    %c0_9 = arith.constant 0 : index
    %18 = vector.load %arg5[%c0_8, %c0_9] : memref<64x32xbf16, #tpu.memory_space<vmem>>, vector<64x32xbf16>
    %cst = arith.constant dense<0.000000e+00> : vector<64x32xf32>
    %19 = tpu.matmul %17, %18, %cst {dimension_numbers = #tpu.dot_dimension_numbers<[1], [0], [0], [1], [0, 0, 1, 1], [], []>} : vector<64x64xbf16>, vector<64x32xbf16>, vector<64x32xf32> -> vector<64x32xf32>
    %20 = arith.subf %19, %9 : vector<64x32xf32>
    %21 = vector.broadcast %6 : vector<64x1xf32> to vector<64x32xf32>
    %22 = arith.mulf %20, %21 : vector<64x32xf32>
    %23 = tpu.concatenate %22, %9 in 1 : vector<64x32xf32>, vector<64x32xf32> -> vector<64x64xf32>
    %cst_10 = arith.constant dense<0.000000e+00> : vector<64x64xf32>
    %24 = tpu.matmul %23, %1, %cst_10 {dimension_numbers = #tpu.dot_dimension_numbers<[1], [0], [0], [1], [0, 0, 1, 1], [], []>} : vector<64x64xf32>, vector<64x64xf32>, vector<64x64xf32> -> vector<64x64xf32>
    %25 = vector.broadcast %2 : vector<1x64xf32> to vector<64x64xf32>
    %26 = arith.addf %24, %25 : vector<64x64xf32>
    %27 = arith.index_cast %4 : i32 to index
    %c0_11 = arith.constant 0 : index
    %28 = vector.load %arg15[%27, %c0_11] : memref<64x64xf32, #tpu.memory_space<vmem>>, vector<64x64xf32>
    tpu.vector_store %arg15[%27, %c0_11], %26 {strides = array<i32>} : memref<64x64xf32, #tpu.memory_space<vmem>>, vector<64x64xf32>,
    %c1_i32 = arith.constant 1 : i32
    %c0_12 = arith.constant 0 : index
    %c0_13 = arith.constant 0 : index
    %29 = vector.load %arg4[%c0_12, %c0_13] : memref<64x1xf32, #tpu.memory_space<vmem>>, vector<64x1xf32>
    %c0_14 = arith.constant 0 : index
    %c0_15 = arith.constant 0 : index
    %30 = vector.load %arg15[%c0_14, %c0_15] : memref<64x64xf32, #tpu.memory_space<vmem>>, vector<64x64xf32>
    %31 = vector.broadcast %29 : vector<64x1xf32> to vector<64x64xf32>
    %32 = arith.mulf %30, %31 : vector<64x64xf32>
    %cst_16 = arith.constant dense<0.000000e+00> : vector<64xf32>
    %33 = vector.multi_reduction <add>, %32, %cst_16 [0] : vector<64x64xf32> to vector<64xf32>
    %34 = vector.shape_cast %33 : vector<64xf32> to vector<1x64xf32>
    %35 = arith.mulf %32, %30 : vector<64x64xf32>
    %cst_17 = arith.constant dense<0.000000e+00> : vector<64xf32>
    %36 = vector.multi_reduction <add>, %35, %cst_17 [0] : vector<64x64xf32> to vector<64xf32>
    %37 = vector.shape_cast %36 : vector<64xf32> to vector<1x64xf32>
    %c0_18 = arith.constant 0 : index
    %c0_19 = arith.constant 0 : index
    %38 = vector.load %arg8[%c0_18, %c0_19] : memref<1x64xf32, #tpu.memory_space<vmem>>, vector<1x64xf32>
    %c0_20 = arith.constant 0 : index
    %c0_21 = arith.constant 0 : index
    %39 = vector.load %arg9[%c0_20, %c0_21] : memref<1x64xf32, #tpu.memory_space<vmem>>, vector<1x64xf32>
    %cst_22 = arith.constant 1.562500e-02 : f32
    %40 = vector.broadcast %cst_22 : f32 to vector<1x64xf32>
    %41 = arith.mulf %34, %40 : vector<1x64xf32>
    %cst_23 = arith.constant 1.562500e-02 : f32
    %42 = vector.broadcast %cst_23 : f32 to vector<1x64xf32>
    %43 = arith.mulf %37, %42 : vector<1x64xf32>
    %44 = arith.mulf %41, %41 : vector<1x64xf32>
    %45 = arith.subf %43, %44 : vector<1x64xf32>
    %cst_24 = arith.constant 0.000000e+00 : f32
    %46 = vector.broadcast %cst_24 : f32 to vector<1x64xf32>
    %47 = arith.maximumf %45, %46 : vector<1x64xf32>
    %48 = vector.broadcast %41 : vector<1x64xf32> to vector<64x64xf32>
    %49 = arith.subf %30, %48 : vector<64x64xf32>
    %cst_25 = arith.constant 9.99999974E-6 : f32
    %50 = vector.broadcast %cst_25 : f32 to vector<1x64xf32>
    %51 = arith.addf %47, %50 : vector<1x64xf32>
    %52 = math.rsqrt %51 : vector<1x64xf32>
    %53 = vector.broadcast %52 : vector<1x64xf32> to vector<64x64xf32>
    %54 = arith.mulf %49, %53 : vector<64x64xf32>
    %55 = vector.broadcast %38 : vector<1x64xf32> to vector<64x64xf32>
    %56 = arith.mulf %54, %55 : vector<64x64xf32>
    %57 = vector.broadcast %39 : vector<1x64xf32> to vector<64x64xf32>
    %58 = arith.addf %56, %57 : vector<64x64xf32>
    %cst_26 = arith.constant 0.000000e+00 : f32
    %59 = vector.broadcast %cst_26 : f32 to vector<64x64xf32>
    %60 = arith.maximumf %58, %59 : vector<64x64xf32>
    %c0_27 = arith.constant 0 : index
    %c0_28 = arith.constant 0 : index
    %61 = vector.load %arg10[%c0_27, %c0_28] : memref<64x64xf32, #tpu.memory_space<vmem>>, vector<64x64xf32>
    %cst_29 = arith.constant dense<0.000000e+00> : vector<64x64xf32>
    %62 = tpu.matmul %60, %61, %cst_29 {dimension_numbers = #tpu.dot_dimension_numbers<[1], [0], [0], [1], [0, 0, 1, 1], [], []>} : vector<64x64xf32>, vector<64x64xf32>, vector<64x64xf32> -> vector<64x64xf32>
    %63 = vector.extract_strided_slice %62 {offsets = [0, 0], sizes = [64, 32], strides = [1, 1]} : vector<64x64xf32> to vector<64x32xf32>
    %64 = arith.truncf %63 : vector<64x32xf32> to vector<64x32xbf16>
    %c0_30 = arith.constant 0 : index
    %c0_31 = arith.constant 0 : index
    %65 = vector.load %arg16[%c0_30, %c0_31] : memref<64x32xbf16, #tpu.memory_space<vmem>>, vector<64x32xbf16>
    tpu.vector_store %arg16[%c0_30, %c0_31], %64 {strides = array<i32>} : memref<64x32xbf16, #tpu.memory_space<vmem>>, vector<64x32xbf16>,
    %66 = vector.extract_strided_slice %62 {offsets = [0, 32], sizes = [64, 32], strides = [1, 1]} : vector<64x64xf32> to vector<64x32xf32>
    %c0_32 = arith.constant 0 : index
    %c0_33 = arith.constant 0 : index
    %67 = vector.load %arg11[%c0_32, %c0_33] : memref<1x32xf32, #tpu.memory_space<vmem>>, vector<1x32xf32>
    %68 = vector.broadcast %67 : vector<1x32xf32> to vector<64x32xf32>
    %69 = arith.addf %66, %68 : vector<64x32xf32>
    %c0_34 = arith.constant 0 : index
    %c0_35 = arith.constant 0 : index
    %70 = vector.load %arg17[%c0_34, %c0_35] : memref<64x32xf32, #tpu.memory_space<vmem>>, vector<64x32xf32>
    tpu.vector_store %arg17[%c0_34, %c0_35], %69 {strides = array<i32>} : memref<64x32xf32, #tpu.memory_space<vmem>>, vector<64x32xf32>,
    %c0_i32_36 = arith.constant 0 : i32
    %c64_i32_37 = arith.constant 64 : i32
    %71 = arith.muli %c0_i32_36, %c64_i32_37 : i32
    %72 = tpu.assume_multiple %71, 16 : i32
    %73 = arith.index_cast %72 : i32 to index
    %c0_38 = arith.constant 0 : index
    %74 = vector.load %arg3[%73, %c0_38] : memref<64x1xf32, #tpu.memory_space<vmem>>, vector<64x1xf32>
    %75 = arith.index_cast %72 : i32 to index
    %c0_39 = arith.constant 0 : index
    %76 = vector.load %arg16[%75, %c0_39] : memref<64x32xbf16, #tpu.memory_space<vmem>>, vector<64x32xbf16>
    %77 = arith.index_cast %72 : i32 to index
    %c0_40 = arith.constant 0 : index
    %78 = vector.load %arg1[%77, %c0_40] : memref<64x1xi32, #tpu.memory_space<vmem>>, vector<64x1xi32>
    %79 = vector.broadcast %78 : vector<64x1xi32> to vector<64x64xi32>
    %80 = vector.broadcast %0 : vector<1x64xi32> to vector<64x64xi32>
    %81 = arith.cmpi eq, %79, %80 : vector<64x64xi32>
    %82 = arith.extui %81 : vector<64x64xi1> to vector<64x64xi32>
    %83 = arith.sitofp %82 : vector<64x64xi32> to vector<64x64xf32>
    %84 = arith.truncf %83 : vector<64x64xf32> to vector<64x64xbf16>
    %c0_41 = arith.constant 0 : index
    %c0_42 = arith.constant 0 : index
    %85 = vector.load %arg16[%c0_41, %c0_42] : memref<64x32xbf16, #tpu.memory_space<vmem>>, vector<64x32xbf16>
    %cst_43 = arith.constant dense<0.000000e+00> : vector<64x32xf32>
    %86 = tpu.matmul %84, %85, %cst_43 {dimension_numbers = #tpu.dot_dimension_numbers<[1], [0], [0], [1], [0, 0, 1, 1], [], []>} : vector<64x64xbf16>, vector<64x32xbf16>, vector<64x32xf32> -> vector<64x32xf32>
    %87 = arith.extf %76 : vector<64x32xbf16> to vector<64x32xf32>
    %88 = arith.subf %86, %87 : vector<64x32xf32>
    %89 = vector.broadcast %74 : vector<64x1xf32> to vector<64x32xf32>
    %90 = arith.mulf %88, %89 : vector<64x32xf32>
    %91 = arith.index_cast %72 : i32 to index
    %c0_44 = arith.constant 0 : index
    %92 = vector.load %arg17[%91, %c0_44] : memref<64x32xf32, #tpu.memory_space<vmem>>, vector<64x32xf32>
    %93 = arith.addf %90, %92 : vector<64x32xf32>
    %94 = arith.index_cast %72 : i32 to index
    %c0_45 = arith.constant 0 : index
    %95 = vector.load %arg18[%94, %c0_45] : memref<64x32xf32, #tpu.memory_space<vmem>>, vector<64x32xf32>
    tpu.vector_store %arg18[%94, %c0_45], %93 {strides = array<i32>} : memref<64x32xf32, #tpu.memory_space<vmem>>, vector<64x32xf32>,
    %c1_i32_46 = arith.constant 1 : i32
    %c0_47 = arith.constant 0 : index
    %c0_48 = arith.constant 0 : index
    %96 = vector.load %arg18[%c0_47, %c0_48] : memref<64x32xf32, #tpu.memory_space<vmem>>, vector<64x32xf32>
    %97 = vector.broadcast %29 : vector<64x1xf32> to vector<64x32xf32>
    %98 = arith.mulf %96, %97 : vector<64x32xf32>
    %cst_49 = arith.constant dense<0.000000e+00> : vector<32xf32>
    %99 = vector.multi_reduction <add>, %98, %cst_49 [0] : vector<64x32xf32> to vector<32xf32>
    %100 = vector.shape_cast %99 : vector<32xf32> to vector<1x32xf32>
    %101 = arith.mulf %98, %96 : vector<64x32xf32>
    %cst_50 = arith.constant dense<0.000000e+00> : vector<32xf32>
    %102 = vector.multi_reduction <add>, %101, %cst_50 [0] : vector<64x32xf32> to vector<32xf32>
    %103 = vector.shape_cast %102 : vector<32xf32> to vector<1x32xf32>
    %c0_51 = arith.constant 0 : index
    %c0_52 = arith.constant 0 : index
    %104 = vector.load %arg12[%c0_51, %c0_52] : memref<1x32xf32, #tpu.memory_space<vmem>>, vector<1x32xf32>
    %c0_53 = arith.constant 0 : index
    %c0_54 = arith.constant 0 : index
    %105 = vector.load %arg13[%c0_53, %c0_54] : memref<1x32xf32, #tpu.memory_space<vmem>>, vector<1x32xf32>
    %cst_55 = arith.constant 1.562500e-02 : f32
    %106 = vector.broadcast %cst_55 : f32 to vector<1x32xf32>
    %107 = arith.mulf %100, %106 : vector<1x32xf32>
    %cst_56 = arith.constant 1.562500e-02 : f32
    %108 = vector.broadcast %cst_56 : f32 to vector<1x32xf32>
    %109 = arith.mulf %103, %108 : vector<1x32xf32>
    %110 = arith.mulf %107, %107 : vector<1x32xf32>
    %111 = arith.subf %109, %110 : vector<1x32xf32>
    %cst_57 = arith.constant 0.000000e+00 : f32
    %112 = vector.broadcast %cst_57 : f32 to vector<1x32xf32>
    %113 = arith.maximumf %111, %112 : vector<1x32xf32>
    %114 = vector.broadcast %107 : vector<1x32xf32> to vector<64x32xf32>
    %115 = arith.subf %96, %114 : vector<64x32xf32>
    %cst_58 = arith.constant 9.99999974E-6 : f32
    %116 = vector.broadcast %cst_58 : f32 to vector<1x32xf32>
    %117 = arith.addf %113, %116 : vector<1x32xf32>
    %118 = math.rsqrt %117 : vector<1x32xf32>
    %119 = vector.broadcast %118 : vector<1x32xf32> to vector<64x32xf32>
    %120 = arith.mulf %115, %119 : vector<64x32xf32>
    %121 = vector.broadcast %104 : vector<1x32xf32> to vector<64x32xf32>
    %122 = arith.mulf %120, %121 : vector<64x32xf32>
    %123 = vector.broadcast %105 : vector<1x32xf32> to vector<64x32xf32>
    %124 = arith.addf %122, %123 : vector<64x32xf32>
    %cst_59 = arith.constant 0.000000e+00 : f32
    %125 = vector.broadcast %cst_59 : f32 to vector<64x32xf32>
    %126 = arith.maximumf %124, %125 : vector<64x32xf32>
    %c0_60 = arith.constant 0 : index
    %c0_61 = arith.constant 0 : index
    %127 = vector.load %arg14[%c0_60, %c0_61] : memref<64x32xf32, #tpu.memory_space<vmem>>, vector<64x32xf32>
    tpu.vector_store %arg14[%c0_60, %c0_61], %126 {strides = array<i32>} : memref<64x32xf32, #tpu.memory_space<vmem>>, vector<64x32xf32>,
    return
  }
  func.func @transform_0(%arg0: i32) -> (i32, i32) {
    %c0_i32 = arith.constant 0 : i32
    %c0_i32_0 = arith.constant 0 : i32
    %c0_i32_1 = arith.constant 0 : i32
    return %c0_i32, %c0_i32_0 : i32, i32
  }
  func.func @transform_1(%arg0: i32) -> (i32, i32) {
    %c0_i32 = arith.constant 0 : i32
    %c0_i32_0 = arith.constant 0 : i32
    %c0_i32_1 = arith.constant 0 : i32
    return %c0_i32, %c0_i32_0 : i32, i32
  }
  func.func @transform_2(%arg0: i32) -> (i32, i32) {
    %c0_i32 = arith.constant 0 : i32
    %c0_i32_0 = arith.constant 0 : i32
    %c0_i32_1 = arith.constant 0 : i32
    return %c0_i32, %c0_i32_0 : i32, i32
  }
  func.func @transform_3(%arg0: i32) -> (i32, i32) {
    %c0_i32 = arith.constant 0 : i32
    %c0_i32_0 = arith.constant 0 : i32
    %c0_i32_1 = arith.constant 0 : i32
    return %c0_i32, %c0_i32_0 : i32, i32
  }
  func.func @transform_4(%arg0: i32) -> (i32, i32) {
    %c0_i32 = arith.constant 0 : i32
    %c0_i32_0 = arith.constant 0 : i32
    %c0_i32_1 = arith.constant 0 : i32
    return %c0_i32, %c0_i32_0 : i32, i32
  }
  func.func @transform_5(%arg0: i32) -> (i32, i32) {
    %c0_i32 = arith.constant 0 : i32
    %c0_i32_0 = arith.constant 0 : i32
    %c0_i32_1 = arith.constant 0 : i32
    return %c0_i32, %c0_i32_0 : i32, i32
  }
  func.func @transform_6(%arg0: i32) -> (i32, i32) {
    %c0_i32 = arith.constant 0 : i32
    %c0_i32_0 = arith.constant 0 : i32
    %c0_i32_1 = arith.constant 0 : i32
    return %c0_i32, %c0_i32_0 : i32, i32
  }
  func.func @transform_7(%arg0: i32) -> (i32, i32) {
    %c0_i32 = arith.constant 0 : i32
    %c0_i32_0 = arith.constant 0 : i32
    %c0_i32_1 = arith.constant 0 : i32
    return %c0_i32, %c0_i32_0 : i32, i32
  }
  func.func @transform_8(%arg0: i32) -> (i32, i32) {
    %c0_i32 = arith.constant 0 : i32
    %c0_i32_0 = arith.constant 0 : i32
    %c0_i32_1 = arith.constant 0 : i32
    return %c0_i32, %c0_i32_0 : i32, i32
  }
  func.func @transform_9(%arg0: i32) -> (i32, i32) {
    %c0_i32 = arith.constant 0 : i32
    %c0_i32_0 = arith.constant 0 : i32
    %c0_i32_1 = arith.constant 0 : i32
    return %c0_i32, %c0_i32_0 : i32, i32
  }
  func.func @transform_10(%arg0: i32) -> (i32, i32) {
    %c0_i32 = arith.constant 0 : i32
    %c0_i32_0 = arith.constant 0 : i32
    %c0_i32_1 = arith.constant 0 : i32
    return %c0_i32, %c0_i32_0 : i32, i32
  }
  func.func @transform_11(%arg0: i32) -> (i32, i32) {
    %c0_i32 = arith.constant 0 : i32
    %c0_i32_0 = arith.constant 0 : i32
    %c0_i32_1 = arith.constant 0 : i32
    return %c0_i32, %c0_i32_0 : i32, i32
  }
  func.func @transform_12(%arg0: i32) -> (i32, i32) {
    %c0_i32 = arith.constant 0 : i32
    %c0_i32_0 = arith.constant 0 : i32
    %c0_i32_1 = arith.constant 0 : i32
    return %c0_i32, %c0_i32_0 : i32, i32
  }
  func.func @transform_13(%arg0: i32) -> (i32, i32) {
    %c0_i32 = arith.constant 0 : i32
    %c0_i32_0 = arith.constant 0 : i32
    %c0_i32_1 = arith.constant 0 : i32
    return %c0_i32, %c0_i32_0 : i32, i32
  }
}

</mosaic_0001>

<llo_original>
// kernel: cross_graph_forward.1
$region0: #{cross_graph_forward.1}
  #allocation0 [shape = 'u32[]', space=smem, size = 0x4, offset = 0x4, fixed_abs, tag = 'smem constant byte address 0x4 - core index']
  #allocation1 [shape = 'u32[72,128]{1,0:T(1,128)}', space=vmem, size = 0x9000, scoped, tag = 'internal scratch']
  #allocation2 [shape = 'f32[64,64]{1,0:T(8,128)}', space=vmem, size = 0x8000, scoped, tag = 'scratch operand']
  #allocation3 [shape = 'bf16[64,32]{1,0:T(8,128)(2,1)}', space=vmem, size = 0x4000, scoped, tag = 'scratch operand']
  #allocation4 [shape = 'f32[64,32]{1,0:T(8,128)}', space=vmem, size = 0x8000, scoped, tag = 'scratch operand']
  #allocation5 [shape = 'f32[64,32]{1,0:T(8,128)}', space=vmem, size = 0x8000, scoped, tag = 'scratch operand']
  %s0 = inlined_call_operand.vmem [shape: s32[64,1], index: 0, kind: input, shape index: {}]
  %s1 = inlined_call_operand.vmem [shape: s32[1,64], index: 1, kind: input, shape index: {}]
  %s2 = inlined_call_operand.vmem [shape: f32[64,1], index: 2, kind: input, shape index: {}]
  %s3 = inlined_call_operand.vmem [shape: f32[64,1], index: 3, kind: input, shape index: {}]
  %s4 = inlined_call_operand.vmem [shape: bf16[64,32], index: 4, kind: input, shape index: {}]
  %s5 = inlined_call_operand.vmem [shape: f32[64,64], index: 5, kind: input, shape index: {}]
  %s6 = inlined_call_operand.vmem [shape: f32[1,64], index: 6, kind: input, shape index: {}]
  %s7 = inlined_call_operand.vmem [shape: f32[1,64], index: 7, kind: input, shape index: {}]
  %s8 = inlined_call_operand.vmem [shape: f32[1,64], index: 8, kind: input, shape index: {}]
  %s9 = inlined_call_operand.vmem [shape: f32[64,64], index: 9, kind: input, shape index: {}]
  %s10 = inlined_call_operand.vmem [shape: f32[1,32], index: 10, kind: input, shape index: {}]
  %s11 = inlined_call_operand.vmem [shape: f32[1,32], index: 11, kind: input, shape index: {}]
  %s12 = inlined_call_operand.vmem [shape: f32[1,32], index: 12, kind: input, shape index: {}]
  %s13 = inlined_call_operand.vmem [shape: f32[64,32], index: 13, kind: output, shape index: {}]
  %s14 = sld [smem:[#allocation0]]
  $region62: #{cross_graph_forward.1} parent=0
    _
  %s16 = ssub.s32 1, %s14
  %s17 = scalar_select 0, %s16, %s14
  // Predicated region
  $region2: #{cross_graph_forward.1} parent=0 // pred_check
    _
  $region3: #{cross_graph_forward.1} parent=0 // pred_check_branch
    %19 = sbr.rel (0) target = $region5
  $region4: #{cross_graph_forward.1} parent=0 // pred_region
    _
  $region5: #{cross_graph_forward.1} parent=0 // pred_fallthru
    _
  // Predicated region
  $region6: #{cross_graph_forward.1} parent=0 // pred_check
    _
  $region7: #{cross_graph_forward.1} parent=0 // pred_check_branch
    %21 = sbr.rel (0) target = $region9
  $region8: #{cross_graph_forward.1} parent=0 // pred_region
    _
  $region9: #{cross_graph_forward.1} parent=0 // pred_fallthru
    _
  // Predicated region
  $region10: #{cross_graph_forward.1} parent=0 // pred_check
    _
  $region11: #{cross_graph_forward.1} parent=0 // pred_check_branch
    %23 = sbr.rel (0) target = $region13
  $region12: #{cross_graph_forward.1} parent=0 // pred_region
    _
  $region13: #{cross_graph_forward.1} parent=0 // pred_fallthru
    _
  // Predicated region
  $region14: #{cross_graph_forward.1} parent=0 // pred_check
    _
  $region15: #{cross_graph_forward.1} parent=0 // pred_check_branch
    %25 = sbr.rel (0) target = $region17
  $region16: #{cross_graph_forward.1} parent=0 // pred_region
    _
  $region17: #{cross_graph_forward.1} parent=0 // pred_fallthru
    _
  // Predicated region
  $region18: #{cross_graph_forward.1} parent=0 // pred_check
    _
  $region19: #{cross_graph_forward.1} parent=0 // pred_check_branch
    %27 = sbr.rel (0) target = $region21
  $region20: #{cross_graph_forward.1} parent=0 // pred_region
    _
  $region21: #{cross_graph_forward.1} parent=0 // pred_fallthru
    _
  // Predicated region
  $region22: #{cross_graph_forward.1} parent=0 // pred_check
    _
  $region23: #{cross_graph_forward.1} parent=0 // pred_check_branch
    %29 = sbr.rel (0) target = $region25
  $region24: #{cross_graph_forward.1} parent=0 // pred_region
    _
  $region25: #{cross_graph_forward.1} parent=0 // pred_fallthru
    _
  // Predicated region
  $region26: #{cross_graph_forward.1} parent=0 // pred_check
    _
  $region27: #{cross_graph_forward.1} parent=0 // pred_check_branch
    %31 = sbr.rel (0) target = $region29
  $region28: #{cross_graph_forward.1} parent=0 // pred_region
    _
  $region29: #{cross_graph_forward.1} parent=0 // pred_fallthru
    _
  // Predicated region
  $region30: #{cross_graph_forward.1} parent=0 // pred_check
    _
  $region31: #{cross_graph_forward.1} parent=0 // pred_check_branch
    %33 = sbr.rel (0) target = $region33
  $region32: #{cross_graph_forward.1} parent=0 // pred_region
    _
  $region33: #{cross_graph_forward.1} parent=0 // pred_fallthru
    _
  // Predicated region
  $region34: #{cross_graph_forward.1} parent=0 // pred_check
    _
  $region35: #{cross_graph_forward.1} parent=0 // pred_check_branch
    %35 = sbr.rel (0) target = $region37
  $region36: #{cross_graph_forward.1} parent=0 // pred_region
    _
  $region37: #{cross_graph_forward.1} parent=0 // pred_fallthru
    _
  // Predicated region
  $region38: #{cross_graph_forward.1} parent=0 // pred_check
    _
  $region39: #{cross_graph_forward.1} parent=0 // pred_check_branch
    %37 = sbr.rel (0) target = $region41
  $region40: #{cross_graph_forward.1} parent=0 // pred_region
    _
  $region41: #{cross_graph_forward.1} parent=0 // pred_fallthru
    _
  // Predicated region
  $region42: #{cross_graph_forward.1} parent=0 // pred_check
    _
  $region43: #{cross_graph_forward.1} parent=0 // pred_check_branch
    %39 = sbr.rel (0) target = $region45
  $region44: #{cross_graph_forward.1} parent=0 // pred_region
    _
  $region45: #{cross_graph_forward.1} parent=0 // pred_fallthru
    _
  // Predicated region
  $region46: #{cross_graph_forward.1} parent=0 // pred_check
    _
  $region47: #{cross_graph_forward.1} parent=0 // pred_check_branch
    %41 = sbr.rel (0) target = $region49
  $region48: #{cross_graph_forward.1} parent=0 // pred_region
    _
  $region49: #{cross_graph_forward.1} parent=0 // pred_fallthru
    _
  // Predicated region
  $region50: #{cross_graph_forward.1} parent=0 // pred_check
    _
  $region51: #{cross_graph_forward.1} parent=0 // pred_check_branch
    %43 = sbr.rel (0) target = $region53
  $region52: #{cross_graph_forward.1} parent=0 // pred_region
    _
  $region53: #{cross_graph_forward.1} parent=0 // pred_fallthru
    _
  %v45 = vld [vmem:[%s1] sm:$0x1]
  %v46 = vld [vmem:[%s5] sm:$0xff]
  %v47 = vld [vmem:[%s5 + $0x8] sm:$0xff]
  %v48 = vld [vmem:[%s5 + $0x10] sm:$0xff]
  %v49 = vld [vmem:[%s5 + $0x18] sm:$0xff]
  %v50 = vld [vmem:[%s5 + $0x20] sm:$0xff]
  %v51 = vld [vmem:[%s5 + $0x28] sm:$0xff]
  %v52 = vld [vmem:[%s5 + $0x30] sm:$0xff]
  %v53 = vld [vmem:[%s5 + $0x38] sm:$0xff]
  %v54 = vld [vmem:[%s6] sm:$0x1]
  %v55 = vld [vmem:[%s2] sm:$0xff]
  %v56 = vld [vmem:[%s2 + $0x8] sm:$0xff]
  %v57 = vld [vmem:[%s2 + $0x10] sm:$0xff]
  %v58 = vld [vmem:[%s2 + $0x18] sm:$0xff]
  %v59 = vld [vmem:[%s2 + $0x20] sm:$0xff]
  %v60 = vld [vmem:[%s2 + $0x28] sm:$0xff]
  %v61 = vld [vmem:[%s2 + $0x30] sm:$0xff]
  %v62 = vld [vmem:[%s2 + $0x38] sm:$0xff]
  %v63 = vld [vmem:[%s4] sm:$0xf]
  %v64 = vld [vmem:[%s4 + $0x4] sm:$0xf]
  %v65 = vld [vmem:[%s4 + $0x8] sm:$0xf]
  %v66 = vld [vmem:[%s4 + $0xc] sm:$0xf]
  %v67 = vld [vmem:[%s4 + $0x10] sm:$0xf]
  %v68 = vld [vmem:[%s4 + $0x14] sm:$0xf]
  %v69 = vld [vmem:[%s4 + $0x18] sm:$0xf]
  %v70 = vld [vmem:[%s4 + $0x1c] sm:$0xf]
  %v71 = vunpack.c.l.bf16 %v63
  %v72 = vunpack.c.l.bf16 %v64
  %v73 = vunpack.c.l.bf16 %v65
  %v74 = vunpack.c.l.bf16 %v66
  %v75 = vunpack.c.l.bf16 %v67
  %v76 = vunpack.c.l.bf16 %v68
  %v77 = vunpack.c.l.bf16 %v69
  %v78 = vunpack.c.l.bf16 %v70
  %v79 = vld [vmem:[%s0] sm:$0xff]
  %v80 = vld [vmem:[%s0 + $0x8] sm:$0xff]
  %v81 = vld [vmem:[%s0 + $0x10] sm:$0xff]
  %v82 = vld [vmem:[%s0 + $0x18] sm:$0xff]
  %v83 = vld [vmem:[%s0 + $0x20] sm:$0xff]
  %v84 = vld [vmem:[%s0 + $0x28] sm:$0xff]
  %v85 = vld [vmem:[%s0 + $0x30] sm:$0xff]
  %v86 = vld [vmem:[%s0 + $0x38] sm:$0xff]
  %87 = vset.pattern.permute.xlu0 0
  %88 = vperm.xlu0 %87, %v79
  %v89 = vpop.permute.xlu0 %88
  %90 = vset.pattern.permute.xlu0 0
  %91 = vperm.xlu0 %90, %v80
  %v92 = vpop.permute.xlu0 %91
  %93 = vset.pattern.permute.xlu0 0
  %94 = vperm.xlu0 %93, %v81
  %v95 = vpop.permute.xlu0 %94
  %96 = vset.pattern.permute.xlu0 0
  %97 = vperm.xlu0 %96, %v82
  %v98 = vpop.permute.xlu0 %97
  %99 = vset.pattern.permute.xlu0 0
  %100 = vperm.xlu0 %99, %v83
  %v101 = vpop.permute.xlu0 %100
  %102 = vset.pattern.permute.xlu0 0
  %103 = vperm.xlu0 %102, %v84
  %v104 = vpop.permute.xlu0 %103
  %105 = vset.pattern.permute.xlu0 0
  %106 = vperm.xlu0 %105, %v85
  %v107 = vpop.permute.xlu0 %106
  %108 = vset.pattern.permute.xlu0 0
  %109 = vperm.xlu0 %108, %v86
  %v110 = vpop.permute.xlu0 %109
  %v111 = vperm.slane %v45, 0
  %vm112 = vcmp.eq.s32.totalorder %v89, %v111
  %vm113 = vcmp.eq.s32.totalorder %v92, %v111
  %vm114 = vcmp.eq.s32.totalorder %v95, %v111
  %vm115 = vcmp.eq.s32.totalorder %v98, %v111
  %vm116 = vcmp.eq.s32.totalorder %v101, %v111
  %vm117 = vcmp.eq.s32.totalorder %v104, %v111
  %vm118 = vcmp.eq.s32.totalorder %v107, %v111
  %vm119 = vcmp.eq.s32.totalorder %v110, %v111
  %v120 = vsel %vm112, 1, 0
  %v121 = vsel %vm113, 1, 0
  %v122 = vsel %vm114, 1, 0
  %v123 = vsel %vm115, 1, 0
  %v124 = vsel %vm116, 1, 0
  %v125 = vsel %vm117, 1, 0
  %v126 = vsel %vm118, 1, 0
  %v127 = vsel %vm119, 1, 0
  %v128 = vcvt.s32.f32 %v120
  %v129 = vcvt.s32.f32 %v121
  %v130 = vcvt.s32.f32 %v122
  %v131 = vcvt.s32.f32 %v123
  %v132 = vcvt.s32.f32 %v124
  %v133 = vcvt.s32.f32 %v125
  %v134 = vcvt.s32.f32 %v126
  %v135 = vcvt.s32.f32 %v127
  %v136 = vpack.c.bf16 %v129, %v128
  %v137 = vpack.c.bf16 %v131, %v130
  %v138 = vpack.c.bf16 %v133, %v132
  %v139 = vpack.c.bf16 %v135, %v134
  %v140 = vld [vmem:[%s4] sm:$0xf]
  %v141 = vld [vmem:[%s4 + $0x4] sm:$0xf]
  %v142 = vld [vmem:[%s4 + $0x8] sm:$0xf]
  %v143 = vld [vmem:[%s4 + $0xc] sm:$0xf]
  %v144 = vld [vmem:[%s4 + $0x10] sm:$0xf]
  %v145 = vld [vmem:[%s4 + $0x14] sm:$0xf]
  %v146 = vld [vmem:[%s4 + $0x18] sm:$0xf]
  %v147 = vld [vmem:[%s4 + $0x1c] sm:$0xf]
  %v156 = vunpack.c.l.b16 %v140
  %v157 = vunpack.c.l.b16 %v141
  %v158 = vunpack.c.l.b16 %v142
  %v159 = vunpack.c.l.b16 %v143
  %v160 = vunpack.c.l.b16 %v144
  %v161 = vunpack.c.l.b16 %v145
  %v162 = vunpack.c.l.b16 %v146
  %v163 = vunpack.c.l.b16 %v147
  %v164 = vpack.c.b16 %v157, %v156
  %v165 = vpack.c.b16 %v159, %v158
  %v166 = vpack.c.b16 %v161, %v160
  %v167 = vpack.c.b16 %v163, %v162
  %vm172 = vcmask 523264
  %v174 = vsel %vm172, %v136, 0
  %v177 = vsel %vm172, %v137, 0
  %v180 = vsel %vm172, %v138, 0
  %v183 = vsel %vm172, %v139, 0
  %185 = vmatpush.bf16.msra.mxu0 0
  %186 = vmatpush.bf16.msra.mxu0 0
  %187 = vmatpush.bf16.msra.mxu0 0
  %188 = vmatpush.bf16.msra.mxu0 0
  %189 = vmatpush.bf16.msra.mxu0 %v167
  %190 = vmatpush.bf16.msra.mxu0 %v166
  %191 = vmatpush.bf16.msra.mxu0 %v165
  %192 = vmatpush.bf16.msra.mxu0 %v164
  %193 = vmatmul.bf16.gmra.mxu0 %v174
  %v194 = vpop.f32.mrf.mxu0
  %v195 = vadd.f32 0.0, %v194
  %v196 = vpop.f32.mrf.mxu0
  %v197 = vadd.f32 0.0, %v196
  %198 = vmatmul.bf16.gmra.mxu0 %v177
  %v199 = vpop.f32.mrf.mxu0
  %v200 = vadd.f32 0.0, %v199
  %v201 = vpop.f32.mrf.mxu0
  %v202 = vadd.f32 0.0, %v201
  %203 = vmatmul.bf16.gmra.mxu0 %v180
  %v204 = vpop.f32.mrf.mxu0
  %v205 = vadd.f32 0.0, %v204
  %v206 = vpop.f32.mrf.mxu0
  %v207 = vadd.f32 0.0, %v206
  %208 = vmatmul.bf16.gmra.mxu0 %v183
  %v209 = vpop.f32.mrf.mxu0
  %v210 = vadd.f32 0.0, %v209
  %v211 = vpop.f32.mrf.mxu0
  %v212 = vadd.f32 0.0, %v211
  %213 = vdwg.mxu0
  %v214 = vsub.f32 %v195, %v71
  %v215 = vsub.f32 %v197, %v72
  %v216 = vsub.f32 %v200, %v73
  %v217 = vsub.f32 %v202, %v74
  %v218 = vsub.f32 %v205, %v75
  %v219 = vsub.f32 %v207, %v76
  %v220 = vsub.f32 %v210, %v77
  %v221 = vsub.f32 %v212, %v78
  %223 = vset.pattern.permute.xlu0 0
  %224 = vperm.xlu0 %223, %v55
  %v225 = vpop.permute.xlu0 %224
  %228 = vset.pattern.permute.xlu0 0
  %229 = vperm.xlu0 %228, %v56
  %v230 = vpop.permute.xlu0 %229
  %233 = vset.pattern.permute.xlu0 0
  %234 = vperm.xlu0 %233, %v57
  %v235 = vpop.permute.xlu0 %234
  %238 = vset.pattern.permute.xlu0 0
  %239 = vperm.xlu0 %238, %v58
  %v240 = vpop.permute.xlu0 %239
  %243 = vset.pattern.permute.xlu0 0
  %244 = vperm.xlu0 %243, %v59
  %v245 = vpop.permute.xlu0 %244
  %248 = vset.pattern.permute.xlu0 0
  %249 = vperm.xlu0 %248, %v60
  %v250 = vpop.permute.xlu0 %249
  %253 = vset.pattern.permute.xlu0 0
  %254 = vperm.xlu0 %253, %v61
  %v255 = vpop.permute.xlu0 %254
  %258 = vset.pattern.permute.xlu0 0
  %259 = vperm.xlu0 %258, %v62
  %v260 = vpop.permute.xlu0 %259
  %v262 = vmul.f32 %v214, %v225
  %v263 = vmul.f32 %v215, %v230
  %v264 = vmul.f32 %v216, %v235
  %v265 = vmul.f32 %v217, %v240
  %v266 = vmul.f32 %v218, %v245
  %v267 = vmul.f32 %v219, %v250
  %v268 = vmul.f32 %v220, %v255
  %v269 = vmul.f32 %v221, %v260
  %278 = vrot.lane.b32.xlu0 %v71, 32
  %v279 = vpop.permute.xlu0 %278
  %280 = vrot.lane.b32.xlu0 %v72, 32
  %v281 = vpop.permute.xlu0 %280
  %282 = vrot.lane.b32.xlu0 %v73, 32
  %v283 = vpop.permute.xlu0 %282
  %284 = vrot.lane.b32.xlu0 %v74, 32
  %v285 = vpop.permute.xlu0 %284
  %286 = vrot.lane.b32.xlu0 %v75, 32
  %v287 = vpop.permute.xlu0 %286
  %288 = vrot.lane.b32.xlu0 %v76, 32
  %v289 = vpop.permute.xlu0 %288
  %290 = vrot.lane.b32.xlu0 %v77, 32
  %v291 = vpop.permute.xlu0 %290
  %292 = vrot.lane.b32.xlu0 %v78, 32
  %v293 = vpop.permute.xlu0 %292
  %vm302 = vcmask 261120
  %v303 = vsel %vm302, %v262, %v279
  %v304 = vsel %vm302, %v263, %v281
  %v305 = vsel %vm302, %v264, %v283
  %v306 = vsel %vm302, %v265, %v285
  %v307 = vsel %vm302, %v266, %v287
  %v308 = vsel %vm302, %v267, %v289
  %v309 = vsel %vm302, %v268, %v291
  %v310 = vsel %vm302, %v269, %v293
  %v312 = vperm.slane %v54, 0
  %v315 = vsel %vm172, %v303, 0
  %v318 = vsel %vm172, %v304, 0
  %v321 = vsel %vm172, %v305, 0
  %v324 = vsel %vm172, %v306, 0
  %v327 = vsel %vm172, %v307, 0
  %v330 = vsel %vm172, %v308, 0
  %v333 = vsel %vm172, %v309, 0
  %v336 = vsel %vm172, %v310, 0
  %338 = vmatpush.msra.mxu0 0.0
  %339 = vmatpush.msra.mxu0 0.0
  %340 = vmatpush.msra.mxu0 0.0
  %341 = vmatpush.msra.mxu0 0.0
  %342 = vmatpush.msra.mxu0 0.0
  %343 = vmatpush.msra.mxu0 0.0
  %344 = vmatpush.msra.mxu0 0.0
  %345 = vmatpush.msra.mxu0 0.0
  %346 = vmatpush.msra.mxu0 %v53
  %347 = vmatpush.msra.mxu0 %v52
  %348 = vmatpush.msra.mxu0 %v51
  %349 = vmatpush.msra.mxu0 %v50
  %350 = vmatpush.msra.mxu0 %v49
  %351 = vmatpush.msra.mxu0 %v48
  %352 = vmatpush.msra.mxu0 %v47
  %353 = vmatpush.msra.mxu0 %v46
  %354 = vmatmul.f32.gmra.mxu0 %v315
  %v355 = vpop.f32.mrf.mxu0
  %v356 = vadd.f32 %v312, %v355
  %357 = vmatmul.f32.gmra.mxu0 %v318
  %v358 = vpop.f32.mrf.mxu0
  %v359 = vadd.f32 %v312, %v358
  %360 = vmatmul.f32.gmra.mxu0 %v321
  %v361 = vpop.f32.mrf.mxu0
  %v362 = vadd.f32 %v312, %v361
  %363 = vmatmul.f32.gmra.mxu0 %v324
  %v364 = vpop.f32.mrf.mxu0
  %v365 = vadd.f32 %v312, %v364
  %366 = vmatmul.f32.gmra.mxu0 %v327
  %v367 = vpop.f32.mrf.mxu0
  %v368 = vadd.f32 %v312, %v367
  %369 = vmatmul.f32.gmra.mxu0 %v330
  %v370 = vpop.f32.mrf.mxu0
  %v371 = vadd.f32 %v312, %v370
  %372 = vmatmul.f32.gmra.mxu0 %v333
  %v373 = vpop.f32.mrf.mxu0
  %v374 = vadd.f32 %v312, %v373
  %375 = vmatmul.f32.gmra.mxu0 %v336
  %v376 = vpop.f32.mrf.mxu0
  %v377 = vadd.f32 %v312, %v376
  %378 = vdwg.mxu0
  %379 = vst.msk [vmem:[#allocation2] sm:$0xff] %vm172, %v356
  %380 = vst.msk [vmem:[#allocation2 + $0x8] sm:$0xff] %vm172, %v359
  %381 = vst.msk [vmem:[#allocation2 + $0x10] sm:$0xff] %vm172, %v362
  %382 = vst.msk [vmem:[#allocation2 + $0x18] sm:$0xff] %vm172, %v365
  %383 = vst.msk [vmem:[#allocation2 + $0x20] sm:$0xff] %vm172, %v368
  %384 = vst.msk [vmem:[#allocation2 + $0x28] sm:$0xff] %vm172, %v371
  %385 = vst.msk [vmem:[#allocation2 + $0x30] sm:$0xff] %vm172, %v374
  %386 = vst.msk [vmem:[#allocation2 + $0x38] sm:$0xff] %vm172, %v377
  %v387 = vld [vmem:[%s3] sm:$0xff]
  %v388 = vld [vmem:[%s3 + $0x8] sm:$0xff]
  %v389 = vld [vmem:[%s3 + $0x10] sm:$0xff]
  %v390 = vld [vmem:[%s3 + $0x18] sm:$0xff]
  %v391 = vld [vmem:[%s3 + $0x20] sm:$0xff]
  %v392 = vld [vmem:[%s3 + $0x28] sm:$0xff]
  %v393 = vld [vmem:[%s3 + $0x30] sm:$0xff]
  %v394 = vld [vmem:[%s3 + $0x38] sm:$0xff]
  %v395 = vld [vmem:[#allocation2] sm:$0xff]
  %v396 = vld [vmem:[#allocation2 + $0x8] sm:$0xff]
  %v397 = vld [vmem:[#allocation2 + $0x10] sm:$0xff]
  %v398 = vld [vmem:[#allocation2 + $0x18] sm:$0xff]
  %v399 = vld [vmem:[#allocation2 + $0x20] sm:$0xff]
  %v400 = vld [vmem:[#allocation2 + $0x28] sm:$0xff]
  %v401 = vld [vmem:[#allocation2 + $0x30] sm:$0xff]
  %v402 = vld [vmem:[#allocation2 + $0x38] sm:$0xff]
  %404 = vset.pattern.permute.xlu0 0
  %405 = vperm.xlu0 %404, %v387
  %v406 = vpop.permute.xlu0 %405
  %409 = vset.pattern.permute.xlu0 0
  %410 = vperm.xlu0 %409, %v388
  %v411 = vpop.permute.xlu0 %410
  %414 = vset.pattern.permute.xlu0 0
  %415 = vperm.xlu0 %414, %v389
  %v416 = vpop.permute.xlu0 %415
  %419 = vset.pattern.permute.xlu0 0
  %420 = vperm.xlu0 %419, %v390
  %v421 = vpop.permute.xlu0 %420
  %424 = vset.pattern.permute.xlu0 0
  %425 = vperm.xlu0 %424, %v391
  %v426 = vpop.permute.xlu0 %425
  %429 = vset.pattern.permute.xlu0 0
  %430 = vperm.xlu0 %429, %v392
  %v431 = vpop.permute.xlu0 %430
  %434 = vset.pattern.permute.xlu0 0
  %435 = vperm.xlu0 %434, %v393
  %v436 = vpop.permute.xlu0 %435
  %439 = vset.pattern.permute.xlu0 0
  %440 = vperm.xlu0 %439, %v394
  %v441 = vpop.permute.xlu0 %440
  %v443 = vmul.f32 %v395, %v406
  %v444 = vmul.f32 %v396, %v411
  %v445 = vmul.f32 %v397, %v416
  %v446 = vmul.f32 %v398, %v421
  %v447 = vmul.f32 %v399, %v426
  %v448 = vmul.f32 %v400, %v431
  %v449 = vmul.f32 %v401, %v436
  %v450 = vmul.f32 %v402, %v441
  %v451 = vsel %vm172, %v443, 0.0
  %v452 = vsel %vm172, %v444, 0.0
  %v453 = vadd.f32 %v451, %v452
  %v454 = vsel %vm172, %v445, 0.0
  %v455 = vadd.f32 %v453, %v454
  %v456 = vsel %vm172, %v446, 0.0
  %v457 = vadd.f32 %v455, %v456
  %v458 = vsel %vm172, %v447, 0.0
  %v459 = vadd.f32 %v457, %v458
  %v460 = vsel %vm172, %v448, 0.0
  %v461 = vadd.f32 %v459, %v460
  %v462 = vsel %vm172, %v449, 0.0
  %v463 = vadd.f32 %v461, %v462
  %v464 = vsel %vm172, %v450, 0.0
  %v465 = vadd.f32 %v463, %v464
  %v466 = vrot.slane %v465, 4
  %v467 = vadd.f32 %v465, %v466
  %v468 = vrot.slane %v467, 2
  %v469 = vadd.f32 %v467, %v468
  %v470 = vrot.slane %v469, 1
  %v471 = vadd.f32 %v469, %v470
  %v472 = vmul.f32 %v443, %v395
  %v473 = vmul.f32 %v444, %v396
  %v474 = vmul.f32 %v445, %v397
  %v475 = vmul.f32 %v446, %v398
  %v476 = vmul.f32 %v447, %v399
  %v477 = vmul.f32 %v448, %v400
  %v478 = vmul.f32 %v449, %v401
  %v479 = vmul.f32 %v450, %v402
  %v480 = vsel %vm172, %v472, 0.0
  %v481 = vsel %vm172, %v473, 0.0
  %v482 = vadd.f32 %v480, %v481
  %v483 = vsel %vm172, %v474, 0.0
  %v484 = vadd.f32 %v482, %v483
  %v485 = vsel %vm172, %v475, 0.0
  %v486 = vadd.f32 %v484, %v485
  %v487 = vsel %vm172, %v476, 0.0
  %v488 = vadd.f32 %v486, %v487
  %v489 = vsel %vm172, %v477, 0.0
  %v490 = vadd.f32 %v488, %v489
  %v491 = vsel %vm172, %v478, 0.0
  %v492 = vadd.f32 %v490, %v491
  %v493 = vsel %vm172, %v479, 0.0
  %v494 = vadd.f32 %v492, %v493
  %v495 = vrot.slane %v494, 4
  %v496 = vadd.f32 %v494, %v495
  %v497 = vrot.slane %v496, 2
  %v498 = vadd.f32 %v496, %v497
  %v499 = vrot.slane %v498, 1
  %v500 = vadd.f32 %v498, %v499
  %v501 = vld [vmem:[%s7] sm:$0x1]
  %v502 = vld [vmem:[%s8] sm:$0x1]
  %v503 = vmul.f32 %v471, 0.015625
  %v504 = vmul.f32 %v500, 0.015625
  %v505 = vmul.f32 %v503, %v503
  %v506 = vsub.f32 %v504, %v505
  %v507 = vmax.f32 %v506, 0.0
  %v508 = vsub.f32 %v395, %v503
  %v509 = vsub.f32 %v396, %v503
  %v510 = vsub.f32 %v397, %v503
  %v511 = vsub.f32 %v398, %v503
  %v512 = vsub.f32 %v399, %v503
  %v513 = vsub.f32 %v400, %v503
  %v514 = vsub.f32 %v401, %v503
  %v515 = vsub.f32 %v402, %v503
  %v516 = vadd.f32 %v507, 1e-05
  %v517 = vrsqrt.pop %v516
  %v518 = vmul.f32 %v517, %v516
  %v519 = vmul.f32 %v518, %v517
  %v520 = vmul.f32 0.5, %v519
  %v521 = vsub.f32 1.5, %v520
  %v522 = vmul.f32 %v517, %v521
  %vm523 = vweird.f32 %v516
  %vm524 = vweird.f32 %v517
  %vm525 = vmor %vm523, %vm524
  %v526 = vsel %vm525, %v517, %v522
  %v527 = vmul.f32 %v508, %v526
  %v528 = vmul.f32 %v509, %v526
  %v529 = vmul.f32 %v510, %v526
  %v530 = vmul.f32 %v511, %v526
  %v531 = vmul.f32 %v512, %v526
  %v532 = vmul.f32 %v513, %v526
  %v533 = vmul.f32 %v514, %v526
  %v534 = vmul.f32 %v515, %v526
  %v536 = vperm.slane %v501, 0
  %v538 = vmul.f32 %v527, %v536
  %v539 = vmul.f32 %v528, %v536
  %v540 = vmul.f32 %v529, %v536
  %v541 = vmul.f32 %v530, %v536
  %v542 = vmul.f32 %v531, %v536
  %v543 = vmul.f32 %v532, %v536
  %v544 = vmul.f32 %v533, %v536
  %v545 = vmul.f32 %v534, %v536
  %v547 = vperm.slane %v502, 0
  %v549 = vadd.f32 %v538, %v547
  %v550 = vadd.f32 %v539, %v547
  %v551 = vadd.f32 %v540, %v547
  %v552 = vadd.f32 %v541, %v547
  %v553 = vadd.f32 %v542, %v547
  %v554 = vadd.f32 %v543, %v547
  %v555 = vadd.f32 %v544, %v547
  %v556 = vadd.f32 %v545, %v547
  %v557 = vmax.f32 %v549, 0.0
  %v558 = vmax.f32 %v550, 0.0
  %v559 = vmax.f32 %v551, 0.0
  %v560 = vmax.f32 %v552, 0.0
  %v561 = vmax.f32 %v553, 0.0
  %v562 = vmax.f32 %v554, 0.0
  %v563 = vmax.f32 %v555, 0.0
  %v564 = vmax.f32 %v556, 0.0
  %v565 = vld [vmem:[%s9] sm:$0xff]
  %v566 = vld [vmem:[%s9 + $0x8] sm:$0xff]
  %v567 = vld [vmem:[%s9 + $0x10] sm:$0xff]
  %v568 = vld [vmem:[%s9 + $0x18] sm:$0xff]
  %v569 = vld [vmem:[%s9 + $0x20] sm:$0xff]
  %v570 = vld [vmem:[%s9 + $0x28] sm:$0xff]
  %v571 = vld [vmem:[%s9 + $0x30] sm:$0xff]
  %v572 = vld [vmem:[%s9 + $0x38] sm:$0xff]
  %v574 = vsel %vm172, %v557, 0
  %v577 = vsel %vm172, %v558, 0
  %v580 = vsel %vm172, %v559, 0
  %v583 = vsel %vm172, %v560, 0
  %v586 = vsel %vm172, %v561, 0
  %v589 = vsel %vm172, %v562, 0
  %v592 = vsel %vm172, %v563, 0
  %v595 = vsel %vm172, %v564, 0
  %597 = vmatpush.msra.mxu0 0.0
  %598 = vmatpush.msra.mxu0 0.0
  %599 = vmatpush.msra.mxu0 0.0
  %600 = vmatpush.msra.mxu0 0.0
  %601 = vmatpush.msra.mxu0 0.0
  %602 = vmatpush.msra.mxu0 0.0
  %603 = vmatpush.msra.mxu0 0.0
  %604 = vmatpush.msra.mxu0 0.0
  %605 = vmatpush.msra.mxu0 %v572
  %606 = vmatpush.msra.mxu0 %v571
  %607 = vmatpush.msra.mxu0 %v570
  %608 = vmatpush.msra.mxu0 %v569
  %609 = vmatpush.msra.mxu0 %v568
  %610 = vmatpush.msra.mxu0 %v567
  %611 = vmatpush.msra.mxu0 %v566
  %612 = vmatpush.msra.mxu0 %v565
  %613 = vmatmul.f32.gmra.mxu0 %v574
  %v614 = vpop.f32.mrf.mxu0
  %v615 = vadd.f32 0.0, %v614
  %616 = vmatmul.f32.gmra.mxu0 %v577
  %v617 = vpop.f32.mrf.mxu0
  %v618 = vadd.f32 0.0, %v617
  %619 = vmatmul.f32.gmra.mxu0 %v580
  %v620 = vpop.f32.mrf.mxu0
  %v621 = vadd.f32 0.0, %v620
  %622 = vmatmul.f32.gmra.mxu0 %v583
  %v623 = vpop.f32.mrf.mxu0
  %v624 = vadd.f32 0.0, %v623
  %625 = vmatmul.f32.gmra.mxu0 %v586
  %v626 = vpop.f32.mrf.mxu0
  %v627 = vadd.f32 0.0, %v626
  %628 = vmatmul.f32.gmra.mxu0 %v589
  %v629 = vpop.f32.mrf.mxu0
  %v630 = vadd.f32 0.0, %v629
  %631 = vmatmul.f32.gmra.mxu0 %v592
  %v632 = vpop.f32.mrf.mxu0
  %v633 = vadd.f32 0.0, %v632
  %634 = vmatmul.f32.gmra.mxu0 %v595
  %v635 = vpop.f32.mrf.mxu0
  %v636 = vadd.f32 0.0, %v635
  %637 = vdwg.mxu0
  %v638 = vpack.c.bf16 %v615, %v615
  %v639 = vpack.c.bf16 %v618, %v618
  %v640 = vpack.c.bf16 %v621, %v621
  %v641 = vpack.c.bf16 %v624, %v624
  %v642 = vpack.c.bf16 %v627, %v627
  %v643 = vpack.c.bf16 %v630, %v630
  %v644 = vpack.c.bf16 %v633, %v633
  %v645 = vpack.c.bf16 %v636, %v636
  %vm646 = vcmask 257024
  %647 = vst.msk [vmem:[#allocation3] sm:$0xf] %vm646, %v638
  %648 = vst.msk [vmem:[#allocation3 + $0x4] sm:$0xf] %vm646, %v639
  %649 = vst.msk [vmem:[#allocation3 + $0x8] sm:$0xf] %vm646, %v640
  %650 = vst.msk [vmem:[#allocation3 + $0xc] sm:$0xf] %vm646, %v641
  %651 = vst.msk [vmem:[#allocation3 + $0x10] sm:$0xf] %vm646, %v642
  %652 = vst.msk [vmem:[#allocation3 + $0x14] sm:$0xf] %vm646, %v643
  %653 = vst.msk [vmem:[#allocation3 + $0x18] sm:$0xf] %vm646, %v644
  %654 = vst.msk [vmem:[#allocation3 + $0x1c] sm:$0xf] %vm646, %v645
  %v655 = vld [vmem:[%s10] sm:$0x1]
  %v657 = vperm.slane %v655, 0
  %658 = vrot.lane.b32.xlu0 %v657, 32
  %v659 = vpop.permute.xlu0 %658
  %v661 = vadd.f32 %v615, %v659
  %v662 = vadd.f32 %v618, %v659
  %v663 = vadd.f32 %v621, %v659
  %v664 = vadd.f32 %v624, %v659
  %v665 = vadd.f32 %v627, %v659
  %v666 = vadd.f32 %v630, %v659
  %v667 = vadd.f32 %v633, %v659
  %v668 = vadd.f32 %v636, %v659
  %677 = vrot.lane.b32.xlu0 %v661, 96
  %v678 = vpop.permute.xlu0 %677
  %679 = vrot.lane.b32.xlu0 %v662, 96
  %v680 = vpop.permute.xlu0 %679
  %681 = vrot.lane.b32.xlu0 %v663, 96
  %v682 = vpop.permute.xlu0 %681
  %683 = vrot.lane.b32.xlu0 %v664, 96
  %v684 = vpop.permute.xlu0 %683
  %685 = vrot.lane.b32.xlu0 %v665, 96
  %v686 = vpop.permute.xlu0 %685
  %687 = vrot.lane.b32.xlu0 %v666, 96
  %v688 = vpop.permute.xlu0 %687
  %689 = vrot.lane.b32.xlu0 %v667, 96
  %v690 = vpop.permute.xlu0 %689
  %691 = vrot.lane.b32.xlu0 %v668, 96
  %v692 = vpop.permute.xlu0 %691
  %701 = vst.msk [vmem:[#allocation4] sm:$0xff] %vm302, %v678
  %702 = vst.msk [vmem:[#allocation4 + $0x8] sm:$0xff] %vm302, %v680
  %703 = vst.msk [vmem:[#allocation4 + $0x10] sm:$0xff] %vm302, %v682
  %704 = vst.msk [vmem:[#allocation4 + $0x18] sm:$0xff] %vm302, %v684
  %705 = vst.msk [vmem:[#allocation4 + $0x20] sm:$0xff] %vm302, %v686
  %706 = vst.msk [vmem:[#allocation4 + $0x28] sm:$0xff] %vm302, %v688
  %707 = vst.msk [vmem:[#allocation4 + $0x30] sm:$0xff] %vm302, %v690
  %708 = vst.msk [vmem:[#allocation4 + $0x38] sm:$0xff] %vm302, %v692
  %v709 = vld [vmem:[%s2] sm:$0xff]
  %v710 = vld [vmem:[%s2 + $0x8] sm:$0xff]
  %v711 = vld [vmem:[%s2 + $0x10] sm:$0xff]
  %v712 = vld [vmem:[%s2 + $0x18] sm:$0xff]
  %v713 = vld [vmem:[%s2 + $0x20] sm:$0xff]
  %v714 = vld [vmem:[%s2 + $0x28] sm:$0xff]
  %v715 = vld [vmem:[%s2 + $0x30] sm:$0xff]
  %v716 = vld [vmem:[%s2 + $0x38] sm:$0xff]
  %v717 = vld [vmem:[#allocation3] sm:$0xf]
  %v718 = vld [vmem:[#allocation3 + $0x4] sm:$0xf]
  %v719 = vld [vmem:[#allocation3 + $0x8] sm:$0xf]
  %v720 = vld [vmem:[#allocation3 + $0xc] sm:$0xf]
  %v721 = vld [vmem:[#allocation3 + $0x10] sm:$0xf]
  %v722 = vld [vmem:[#allocation3 + $0x14] sm:$0xf]
  %v723 = vld [vmem:[#allocation3 + $0x18] sm:$0xf]
  %v724 = vld [vmem:[#allocation3 + $0x1c] sm:$0xf]
  %v725 = vld [vmem:[%s0] sm:$0xff]
  %v726 = vld [vmem:[%s0 + $0x8] sm:$0xff]
  %v727 = vld [vmem:[%s0 + $0x10] sm:$0xff]
  %v728 = vld [vmem:[%s0 + $0x18] sm:$0xff]
  %v729 = vld [vmem:[%s0 + $0x20] sm:$0xff]
  %v730 = vld [vmem:[%s0 + $0x28] sm:$0xff]
  %v731 = vld [vmem:[%s0 + $0x30] sm:$0xff]
  %v732 = vld [vmem:[%s0 + $0x38] sm:$0xff]
  %733 = vset.pattern.permute.xlu0 0
  %734 = vperm.xlu0 %733, %v725
  %v735 = vpop.permute.xlu0 %734
  %736 = vset.pattern.permute.xlu0 0
  %737 = vperm.xlu0 %736, %v726
  %v738 = vpop.permute.xlu0 %737
  %739 = vset.pattern.permute.xlu0 0
  %740 = vperm.xlu0 %739, %v727
  %v741 = vpop.permute.xlu0 %740
  %742 = vset.pattern.permute.xlu0 0
  %743 = vperm.xlu0 %742, %v728
  %v744 = vpop.permute.xlu0 %743
  %745 = vset.pattern.permute.xlu0 0
  %746 = vperm.xlu0 %745, %v729
  %v747 = vpop.permute.xlu0 %746
  %748 = vset.pattern.permute.xlu0 0
  %749 = vperm.xlu0 %748, %v730
  %v750 = vpop.permute.xlu0 %749
  %751 = vset.pattern.permute.xlu0 0
  %752 = vperm.xlu0 %751, %v731
  %v753 = vpop.permute.xlu0 %752
  %754 = vset.pattern.permute.xlu0 0
  %755 = vperm.xlu0 %754, %v732
  %v756 = vpop.permute.xlu0 %755
  %vm757 = vcmp.eq.s32.totalorder %v735, %v111
  %vm758 = vcmp.eq.s32.totalorder %v738, %v111
  %vm759 = vcmp.eq.s32.totalorder %v741, %v111
  %vm760 = vcmp.eq.s32.totalorder %v744, %v111
  %vm761 = vcmp.eq.s32.totalorder %v747, %v111
  %vm762 = vcmp.eq.s32.totalorder %v750, %v111
  %vm763 = vcmp.eq.s32.totalorder %v753, %v111
  %vm764 = vcmp.eq.s32.totalorder %v756, %v111
  %v765 = vsel %vm757, 1, 0
  %v766 = vsel %vm758, 1, 0
  %v767 = vsel %vm759, 1, 0
  %v768 = vsel %vm760, 1, 0
  %v769 = vsel %vm761, 1, 0
  %v770 = vsel %vm762, 1, 0
  %v771 = vsel %vm763, 1, 0
  %v772 = vsel %vm764, 1, 0
  %v773 = vcvt.s32.f32 %v765
  %v774 = vcvt.s32.f32 %v766
  %v775 = vcvt.s32.f32 %v767
  %v776 = vcvt.s32.f32 %v768
  %v777 = vcvt.s32.f32 %v769
  %v778 = vcvt.s32.f32 %v770
  %v779 = vcvt.s32.f32 %v771
  %v780 = vcvt.s32.f32 %v772
  %v781 = vpack.c.bf16 %v774, %v773
  %v782 = vpack.c.bf16 %v776, %v775
  %v783 = vpack.c.bf16 %v778, %v777
  %v784 = vpack.c.bf16 %v780, %v779
  %v785 = vld [vmem:[#allocation3] sm:$0xf]
  %v786 = vld [vmem:[#allocation3 + $0x4] sm:$0xf]
  %v787 = vld [vmem:[#allocation3 + $0x8] sm:$0xf]
  %v788 = vld [vmem:[#allocation3 + $0xc] sm:$0xf]
  %v789 = vld [vmem:[#allocation3 + $0x10] sm:$0xf]
  %v790 = vld [vmem:[#allocation3 + $0x14] sm:$0xf]
  %v791 = vld [vmem:[#allocation3 + $0x18] sm:$0xf]
  %v792 = vld [vmem:[#allocation3 + $0x1c] sm:$0xf]
  %v801 = vunpack.c.l.b16 %v785
  %v802 = vunpack.c.l.b16 %v786
  %v803 = vunpack.c.l.b16 %v787
  %v804 = vunpack.c.l.b16 %v788
  %v805 = vunpack.c.l.b16 %v789
  %v806 = vunpack.c.l.b16 %v790
  %v807 = vunpack.c.l.b16 %v791
  %v808 = vunpack.c.l.b16 %v792
  %v809 = vpack.c.b16 %v802, %v801
  %v810 = vpack.c.b16 %v804, %v803
  %v811 = vpack.c.b16 %v806, %v805
  %v812 = vpack.c.b16 %v808, %v807
  %v818 = vsel %vm172, %v781, 0
  %v821 = vsel %vm172, %v782, 0
  %v824 = vsel %vm172, %v783, 0
  %v827 = vsel %vm172, %v784, 0
  %829 = vmatpush.bf16.msra.mxu0 0
  %830 = vmatpush.bf16.msra.mxu0 0
  %831 = vmatpush.bf16.msra.mxu0 0
  %832 = vmatpush.bf16.msra.mxu0 0
  %833 = vmatpush.bf16.msra.mxu0 %v812
  %834 = vmatpush.bf16.msra.mxu0 %v811
  %835 = vmatpush.bf16.msra.mxu0 %v810
  %836 = vmatpush.bf16.msra.mxu0 %v809
  %837 = vmatmul.bf16.gmra.mxu0 %v818
  %v838 = vpop.f32.mrf.mxu0
  %v839 = vadd.f32 0.0, %v838
  %v840 = vpop.f32.mrf.mxu0
  %v841 = vadd.f32 0.0, %v840
  %842 = vmatmul.bf16.gmra.mxu0 %v821
  %v843 = vpop.f32.mrf.mxu0
  %v844 = vadd.f32 0.0, %v843
  %v845 = vpop.f32.mrf.mxu0
  %v846 = vadd.f32 0.0, %v845
  %847 = vmatmul.bf16.gmra.mxu0 %v824
  %v848 = vpop.f32.mrf.mxu0
  %v849 = vadd.f32 0.0, %v848
  %v850 = vpop.f32.mrf.mxu0
  %v851 = vadd.f32 0.0, %v850
  %852 = vmatmul.bf16.gmra.mxu0 %v827
  %v853 = vpop.f32.mrf.mxu0
  %v854 = vadd.f32 0.0, %v853
  %v855 = vpop.f32.mrf.mxu0
  %v856 = vadd.f32 0.0, %v855
  %857 = vdwg.mxu0
  %v858 = vunpack.c.l.bf16 %v717
  %v859 = vunpack.c.l.bf16 %v718
  %v860 = vunpack.c.l.bf16 %v719
  %v861 = vunpack.c.l.bf16 %v720
  %v862 = vunpack.c.l.bf16 %v721
  %v863 = vunpack.c.l.bf16 %v722
  %v864 = vunpack.c.l.bf16 %v723
  %v865 = vunpack.c.l.bf16 %v724
  %v866 = vsub.f32 %v839, %v858
  %v867 = vsub.f32 %v841, %v859
  %v868 = vsub.f32 %v844, %v860
  %v869 = vsub.f32 %v846, %v861
  %v870 = vsub.f32 %v849, %v862
  %v871 = vsub.f32 %v851, %v863
  %v872 = vsub.f32 %v854, %v864
  %v873 = vsub.f32 %v856, %v865
  %875 = vset.pattern.permute.xlu0 0
  %876 = vperm.xlu0 %875, %v709
  %v877 = vpop.permute.xlu0 %876
  %880 = vset.pattern.permute.xlu0 0
  %881 = vperm.xlu0 %880, %v710
  %v882 = vpop.permute.xlu0 %881
  %885 = vset.pattern.permute.xlu0 0
  %886 = vperm.xlu0 %885, %v711
  %v887 = vpop.permute.xlu0 %886
  %890 = vset.pattern.permute.xlu0 0
  %891 = vperm.xlu0 %890, %v712
  %v892 = vpop.permute.xlu0 %891
  %895 = vset.pattern.permute.xlu0 0
  %896 = vperm.xlu0 %895, %v713
  %v897 = vpop.permute.xlu0 %896
  %900 = vset.pattern.permute.xlu0 0
  %901 = vperm.xlu0 %900, %v714
  %v902 = vpop.permute.xlu0 %901
  %905 = vset.pattern.permute.xlu0 0
  %906 = vperm.xlu0 %905, %v715
  %v907 = vpop.permute.xlu0 %906
  %910 = vset.pattern.permute.xlu0 0
  %911 = vperm.xlu0 %910, %v716
  %v912 = vpop.permute.xlu0 %911
  %v914 = vmul.f32 %v866, %v877
  %v915 = vmul.f32 %v867, %v882
  %v916 = vmul.f32 %v868, %v887
  %v917 = vmul.f32 %v869, %v892
  %v918 = vmul.f32 %v870, %v897
  %v919 = vmul.f32 %v871, %v902
  %v920 = vmul.f32 %v872, %v907
  %v921 = vmul.f32 %v873, %v912
  %v922 = vld [vmem:[#allocation4] sm:$0xff]
  %v923 = vld [vmem:[#allocation4 + $0x8] sm:$0xff]
  %v924 = vld [vmem:[#allocation4 + $0x10] sm:$0xff]
  %v925 = vld [vmem:[#allocation4 + $0x18] sm:$0xff]
  %v926 = vld [vmem:[#allocation4 + $0x20] sm:$0xff]
  %v927 = vld [vmem:[#allocation4 + $0x28] sm:$0xff]
  %v928 = vld [vmem:[#allocation4 + $0x30] sm:$0xff]
  %v929 = vld [vmem:[#allocation4 + $0x38] sm:$0xff]
  %v930 = vadd.f32 %v914, %v922
  %v931 = vadd.f32 %v915, %v923
  %v932 = vadd.f32 %v916, %v924
  %v933 = vadd.f32 %v917, %v925
  %v934 = vadd.f32 %v918, %v926
  %v935 = vadd.f32 %v919, %v927
  %v936 = vadd.f32 %v920, %v928
  %v937 = vadd.f32 %v921, %v929
  %938 = vst.msk [vmem:[#allocation5] sm:$0xff] %vm302, %v930
  %939 = vst.msk [vmem:[#allocation5 + $0x8] sm:$0xff] %vm302, %v931
  %940 = vst.msk [vmem:[#allocation5 + $0x10] sm:$0xff] %vm302, %v932
  %941 = vst.msk [vmem:[#allocation5 + $0x18] sm:$0xff] %vm302, %v933
  %942 = vst.msk [vmem:[#allocation5 + $0x20] sm:$0xff] %vm302, %v934
  %943 = vst.msk [vmem:[#allocation5 + $0x28] sm:$0xff] %vm302, %v935
  %944 = vst.msk [vmem:[#allocation5 + $0x30] sm:$0xff] %vm302, %v936
  %945 = vst.msk [vmem:[#allocation5 + $0x38] sm:$0xff] %vm302, %v937
  %v946 = vld [vmem:[#allocation5] sm:$0xff]
  %v947 = vld [vmem:[#allocation5 + $0x8] sm:$0xff]
  %v948 = vld [vmem:[#allocation5 + $0x10] sm:$0xff]
  %v949 = vld [vmem:[#allocation5 + $0x18] sm:$0xff]
  %v950 = vld [vmem:[#allocation5 + $0x20] sm:$0xff]
  %v951 = vld [vmem:[#allocation5 + $0x28] sm:$0xff]
  %v952 = vld [vmem:[#allocation5 + $0x30] sm:$0xff]
  %v953 = vld [vmem:[#allocation5 + $0x38] sm:$0xff]
  %v954 = vmul.f32 %v946, %v406
  %v955 = vmul.f32 %v947, %v411
  %v956 = vmul.f32 %v948, %v416
  %v957 = vmul.f32 %v949, %v421
  %v958 = vmul.f32 %v950, %v426
  %v959 = vmul.f32 %v951, %v431
  %v960 = vmul.f32 %v952, %v436
  %v961 = vmul.f32 %v953, %v441
  %v962 = vsel %vm302, %v954, 0.0
  %v963 = vsel %vm302, %v955, 0.0
  %v964 = vadd.f32 %v962, %v963
  %v965 = vsel %vm302, %v956, 0.0
  %v966 = vadd.f32 %v964, %v965
  %v967 = vsel %vm302, %v957, 0.0
  %v968 = vadd.f32 %v966, %v967
  %v969 = vsel %vm302, %v958, 0.0
  %v970 = vadd.f32 %v968, %v969
  %v971 = vsel %vm302, %v959, 0.0
  %v972 = vadd.f32 %v970, %v971
  %v973 = vsel %vm302, %v960, 0.0
  %v974 = vadd.f32 %v972, %v973
  %v975 = vsel %vm302, %v961, 0.0
  %v976 = vadd.f32 %v974, %v975
  %v977 = vrot.slane %v976, 4
  %v978 = vadd.f32 %v976, %v977
  %v979 = vrot.slane %v978, 2
  %v980 = vadd.f32 %v978, %v979
  %v981 = vrot.slane %v980, 1
  %v982 = vadd.f32 %v980, %v981
  %v983 = vmul.f32 %v954, %v946
  %v984 = vmul.f32 %v955, %v947
  %v985 = vmul.f32 %v956, %v948
  %v986 = vmul.f32 %v957, %v949
  %v987 = vmul.f32 %v958, %v950
  %v988 = vmul.f32 %v959, %v951
  %v989 = vmul.f32 %v960, %v952
  %v990 = vmul.f32 %v961, %v953
  %v991 = vsel %vm302, %v983, 0.0
  %v992 = vsel %vm302, %v984, 0.0
  %v993 = vadd.f32 %v991, %v992
  %v994 = vsel %vm302, %v985, 0.0
  %v995 = vadd.f32 %v993, %v994
  %v996 = vsel %vm302, %v986, 0.0
  %v997 = vadd.f32 %v995, %v996
  %v998 = vsel %vm302, %v987, 0.0
  %v999 = vadd.f32 %v997, %v998
  %v1000 = vsel %vm302, %v988, 0.0
  %v1001 = vadd.f32 %v999, %v1000
  %v1002 = vsel %vm302, %v989, 0.0
  %v1003 = vadd.f32 %v1001, %v1002
  %v1004 = vsel %vm302, %v990, 0.0
  %v1005 = vadd.f32 %v1003, %v1004
  %v1006 = vrot.slane %v1005, 4
  %v1007 = vadd.f32 %v1005, %v1006
  %v1008 = vrot.slane %v1007, 2
  %v1009 = vadd.f32 %v1007, %v1008
  %v1010 = vrot.slane %v1009, 1
  %v1011 = vadd.f32 %v1009, %v1010
  %v1012 = vld [vmem:[%s11] sm:$0x1]
  %v1013 = vld [vmem:[%s12] sm:$0x1]
  %v1014 = vmul.f32 %v982, 0.015625
  %v1015 = vmul.f32 %v1011, 0.015625
  %v1016 = vmul.f32 %v1014, %v1014
  %v1017 = vsub.f32 %v1015, %v1016
  %v1018 = vmax.f32 %v1017, 0.0
  %v1019 = vsub.f32 %v946, %v1014
  %v1020 = vsub.f32 %v947, %v1014
  %v1021 = vsub.f32 %v948, %v1014
  %v1022 = vsub.f32 %v949, %v1014
  %v1023 = vsub.f32 %v950, %v1014
  %v1024 = vsub.f32 %v951, %v1014
  %v1025 = vsub.f32 %v952, %v1014
  %v1026 = vsub.f32 %v953, %v1014
  %v1027 = vadd.f32 %v1018, 1e-05
  %v1028 = vrsqrt.pop %v1027
  %v1029 = vmul.f32 %v1028, %v1027
  %v1030 = vmul.f32 %v1029, %v1028
  %v1031 = vmul.f32 0.5, %v1030
  %v1032 = vsub.f32 1.5, %v1031
  %v1033 = vmul.f32 %v1028, %v1032
  %vm1034 = vweird.f32 %v1027
  %vm1035 = vweird.f32 %v1028
  %vm1036 = vmor %vm1034, %vm1035
  %v1037 = vsel %vm1036, %v1028, %v1033
  %v1038 = vmul.f32 %v1019, %v1037
  %v1039 = vmul.f32 %v1020, %v1037
  %v1040 = vmul.f32 %v1021, %v1037
  %v1041 = vmul.f32 %v1022, %v1037
  %v1042 = vmul.f32 %v1023, %v1037
  %v1043 = vmul.f32 %v1024, %v1037
  %v1044 = vmul.f32 %v1025, %v1037
  %v1045 = vmul.f32 %v1026, %v1037
  %v1047 = vperm.slane %v1012, 0
  %v1049 = vmul.f32 %v1038, %v1047
  %v1050 = vmul.f32 %v1039, %v1047
  %v1051 = vmul.f32 %v1040, %v1047
  %v1052 = vmul.f32 %v1041, %v1047
  %v1053 = vmul.f32 %v1042, %v1047
  %v1054 = vmul.f32 %v1043, %v1047
  %v1055 = vmul.f32 %v1044, %v1047
  %v1056 = vmul.f32 %v1045, %v1047
  %v1058 = vperm.slane %v1013, 0
  %v1060 = vadd.f32 %v1049, %v1058
  %v1061 = vadd.f32 %v1050, %v1058
  %v1062 = vadd.f32 %v1051, %v1058
  %v1063 = vadd.f32 %v1052, %v1058
  %v1064 = vadd.f32 %v1053, %v1058
  %v1065 = vadd.f32 %v1054, %v1058
  %v1066 = vadd.f32 %v1055, %v1058
  %v1067 = vadd.f32 %v1056, %v1058
  %v1068 = vmax.f32 %v1060, 0.0
  %v1069 = vmax.f32 %v1061, 0.0
  %v1070 = vmax.f32 %v1062, 0.0
  %v1071 = vmax.f32 %v1063, 0.0
  %v1072 = vmax.f32 %v1064, 0.0
  %v1073 = vmax.f32 %v1065, 0.0
  %v1074 = vmax.f32 %v1066, 0.0
  %v1075 = vmax.f32 %v1067, 0.0
  %1076 = vst.msk [vmem:[%s13] sm:$0xff] %vm302, %v1068
  %1077 = vst.msk [vmem:[%s13 + $0x8] sm:$0xff] %vm302, %v1069
  %1078 = vst.msk [vmem:[%s13 + $0x10] sm:$0xff] %vm302, %v1070
  %1079 = vst.msk [vmem:[%s13 + $0x18] sm:$0xff] %vm302, %v1071
  %1080 = vst.msk [vmem:[%s13 + $0x20] sm:$0xff] %vm302, %v1072
  %1081 = vst.msk [vmem:[%s13 + $0x28] sm:$0xff] %vm302, %v1073
  %1082 = vst.msk [vmem:[%s13 + $0x30] sm:$0xff] %vm302, %v1074
  %1083 = vst.msk [vmem:[%s13 + $0x38] sm:$0xff] %vm302, %v1075
  // Predicated region
  $region54: #{cross_graph_forward.1} parent=0 // pred_check
    _
  $region55: #{cross_graph_forward.1} parent=0 // pred_check_branch
    %1085 = sbr.rel (0) target = $region57
  $region56: #{cross_graph_forward.1} parent=0 // pred_region
    _
  $region57: #{cross_graph_forward.1} parent=0 // pred_fallthru
    _
  // Predicated region
  $region58: #{cross_graph_forward.1} parent=0 // pred_check
    _
  $region59: #{cross_graph_forward.1} parent=0 // pred_check_branch
    %1087 = sbr.rel (0) target = $region61
  $region60: #{cross_graph_forward.1} parent=0 // pred_region
    _
  $region61: #{cross_graph_forward.1} parent=0 // pred_fallthru
    _

</llo_original>
